<compile_context>
chip_gen: v7x
topology: tpu7x:2x2x1
jax: 0.10.0
libtpu: 0.0.40
codegen_flags: <defaults>
</compile_context>

<pallas_src>
import functools

import jax
import jax.numpy as jnp
from jax import lax
from jax.experimental import pallas as pl
from jax.experimental.pallas import tpu as pltpu


# ----------------------------------------------------------------------------
# Tiling helper
# ----------------------------------------------------------------------------
def _choose_time_tile(T, C, *, halo_unit, tile_budget_bytes):
    """Largest tT that is a multiple of halo_unit, divides T, and keeps a single
    f32 (C, tT) slab under tile_budget_bytes.  Falls back to the full T."""
    if T % halo_unit != 0 or T <= halo_unit:
        return T
    max_tt = max(halo_unit,
                 (tile_budget_bytes // max(1, C * 4)) // halo_unit * halo_unit)
    best = None
    tt = halo_unit
    while tt <= min(T, max_tt):
        if T % tt == 0:
            best = tt
        tt += halo_unit
    return best if best is not None else T
    # TODO(synk): handle ragged T (no halo_unit-multiple divisor) with a masked
    # last tile (grid = cdiv(T, tT)) instead of falling back to a single full-T tile.


# ----------------------------------------------------------------------------
# Stage 1: conv1x1 (x part; spk part pre-folded into b1_eff) + PReLU1 + gLN1 stats
# ----------------------------------------------------------------------------
def _in_kernel(x_ref, w1x_ref, b1e_ref, a1_ref, y1_ref, ssum_ref, ssq_ref):
    t = pl.program_id(1)

    @pl.when(t == 0)
    def _():
        ssum_ref[...] = jnp.zeros_like(ssum_ref)
        ssq_ref[...] = jnp.zeros_like(ssq_ref)

    # MXU operands in compute dtype (bf16 by default), f32 accumulation.
    x = x_ref[0].astype(w1x_ref.dtype)                           # (Cin, tT)
    y = jnp.dot(w1x_ref[...], x, preferred_element_type=jnp.float32)  # (Cc, tT) f32
    y = y + b1e_ref[0].astype(jnp.float32)                       # (Cc, 1) broadcast

    a1 = a1_ref[...].astype(jnp.float32)                         # (1, 1) scalar slope
    y = jnp.where(y >= 0.0, y, a1 * y)                           # PReLU1

    y1_ref[0] = y.astype(y1_ref.dtype)                           # bf16 intermediate

    # single-pass gLN1 stats accumulated per batch sample (f32, pre-cast values)
    ssum_ref[...] += jnp.sum(y)
    ssq_ref[...] += jnp.sum(y * y)
    # TODO(synk): lane-partial (1,128) stats accumulators + finalize cross-lane
    # reduction would save one XLU reduce per tile.


# ----------------------------------------------------------------------------
# Stage 2: gLN1 apply (folded scale/shift) + dilated depthwise conv + PReLU2
#          + gLN2 stats.  Halos are narrow blocks of the adjacent y1 columns.
# ----------------------------------------------------------------------------
def _mid_kernel(yc_ref, yl_ref, yr_ref, s1_ref, h1_ref, wd_ref, bd_ref, a2_ref,
                y2_ref, ssum_ref, ssq_ref, *, pad, dilation, ksize, n_t):
    t = pl.program_id(1)

    @pl.when(t == 0)
    def _():
        ssum_ref[...] = jnp.zeros_like(ssum_ref)
        ssq_ref[...] = jnp.zeros_like(ssq_ref)

    sc = s1_ref[0].astype(jnp.float32)                           # (Cc, 1)
    sh = h1_ref[0].astype(jnp.float32)                           # (Cc, 1)

    tT = yc_ref.shape[2]
    zc = yc_ref[0].astype(jnp.float32) * sc + sh                 # gLN1 applied, (Cc, tT)

    if pad > 0:
        if n_t > 1:
            halo = yl_ref.shape[2]
            # only `pad` columns of each narrow halo block are used; true sequence
            # edges are zero-padded (PyTorch zero-pads the *normalized* conv input).
            zl = yl_ref[0, :, halo - pad:halo].astype(jnp.float32) * sc + sh
            zl = jnp.where(t > 0, zl, 0.0)
            zr = yr_ref[0, :, 0:pad].astype(jnp.float32) * sc + sh
            zr = jnp.where(t < n_t - 1, zr, 0.0)
        else:
            zl = jnp.zeros((zc.shape[0], pad), jnp.float32)
            zr = zl
        z = jnp.concatenate([zl, zc, zr], axis=1)                # (Cc, tT + 2*pad)
        # TODO(synk): replace the concatenate with pltpu.roll-based tap shifts plus
        # boundary corrections to keep tap slices lane-aligned and cut the VMEM temp.
    else:
        z = zc

    wd = wd_ref[...].astype(jnp.float32)                         # (Cc, K)
    acc = jnp.zeros(zc.shape, jnp.float32)
    for k in range(ksize):                                       # depthwise taps (cross-correlation)
        acc = acc + wd[:, k:k + 1] * z[:, k * dilation:k * dilation + tT]
    acc = acc + bd_ref[...].astype(jnp.float32)                  # (Cc, 1) broadcast
    # TODO(synk): fold gLN1 scale into wd (per-batch) with first/last-pad-column
    # corrections to drop the per-element scale/shift from this VALU-heavy stage.

    a2 = a2_ref[...].astype(jnp.float32)
    y = jnp.where(acc >= 0.0, acc, a2 * acc)                     # PReLU2

    y2_ref[0] = y.astype(y2_ref.dtype)                           # bf16 intermediate
    ssum_ref[...] += jnp.sum(y)
    ssq_ref[...] += jnp.sum(y * y)


# ----------------------------------------------------------------------------
# Stage 3: gLN2 apply (folded scale/shift) + 1x1 sconv + residual add
# ----------------------------------------------------------------------------
def _out_kernel(y2_ref, s2_ref, h2_ref, ws_ref, bs_ref, x_ref, o_ref):
    sc = s2_ref[0].astype(jnp.float32)                           # (Cc, 1)
    sh = h2_ref[0].astype(jnp.float32)                           # (Cc, 1)
    z = y2_ref[0].astype(jnp.float32) * sc + sh                  # (Cc, tT)
    out = jnp.dot(ws_ref[...], z.astype(ws_ref.dtype),           # bf16 MXU, f32 acc
                  preferred_element_type=jnp.float32)            # (Cin, tT)
    out = out + bs_ref[...].astype(jnp.float32) + x_ref[0].astype(jnp.float32)
    o_ref[0] = out.astype(o_ref.dtype)


# ----------------------------------------------------------------------------
# gLN stats -> folded per-channel scale/shift (tiny per-batch scalar work)
# ----------------------------------------------------------------------------
def _stats_to_scale_shift(ssum, ssq, gamma, beta, n_elems, eps):
    s = ssum[:, 0, 0]
    sq = ssq[:, 0, 0]
    mean = s / n_elems
    # single-pass variance in f32; clamp guards tiny negative rounding.
    var = jnp.maximum(sq / n_elems - mean * mean, 0.0)
    inv = lax.rsqrt(var + eps)
    scale = gamma[None, :, :] * inv[:, None, None]                              # (B, C, 1)
    shift = beta[None, :, :] - gamma[None, :, :] * (mean * inv)[:, None, None]  # (B, C, 1)
    return scale, shift


# ----------------------------------------------------------------------------
# Full TCNBlock_Spk forward
# ----------------------------------------------------------------------------
def tcn_block_spk_forward(x, spk, params, *, kernel_size=3, dilation=1, eps=1e-5,
                          time_tile=None, compute_dtype=jnp.bfloat16,
                          tile_budget_bytes=4 * 1024 * 1024,
                          vmem_limit_bytes=40 * 1024 * 1024):
    B, Cin, T = x.shape
    Cspk = spk.shape[1]
    w1 = params["w1"]                       # (Cc, Cin + Cspk)
    Cc = w1.shape[0]
    K = kernel_size
    pad = dilation * (K - 1) // 2
    assert (K - 1) * dilation == 2 * pad, "even kernel/dilation combos change T (as in PyTorch)"

    # halo unit: smallest 128-multiple covering the conv receptive-field padding
    halo_unit = 128 * max(1, -(-pad // 128))

    tT = time_tile if time_tile is not None else _choose_time_tile(
        T, Cc, halo_unit=halo_unit, tile_budget_bytes=tile_budget_bytes)
    if (T % tT != 0) or ((T // tT) > 1 and (tT % halo_unit != 0)):
        tT = T                               # single-tile fallback (ragged T)
    nT = T // tT
    if nT > 1:
        halo_blk = halo_unit                 # multiple of 128, divides tT, >= pad
    else:
        halo_blk = 128 if (T >= 128 and T % 128 == 0) else T   # halos unused; keep legal
    hb_per_tile = tT // halo_blk
    n_hb = T // halo_blk

    # ---- parameters (cast / pre-fold once, outside the grid) -------------------
    w1x = w1[:, :Cin].astype(compute_dtype)                    # (Cc, Cin) MXU operand
    w1r = w1[:, Cin:].astype(jnp.float32)                      # (Cc, Cspk)
    b1 = params["b1"].astype(jnp.float32).reshape(Cc, 1)
    # fold spk path of the 1x1 conv into a per-batch bias: b1_eff = w1r @ spk + b1
    b1_eff = (jnp.einsum("ck,bk->bc", w1r, spk.astype(jnp.float32))[:, :, None]
              + b1[None]).astype(jnp.float32)                  # (B, Cc, 1)
    a1 = jnp.asarray(params["a1"], jnp.float32).reshape(1, 1)
    wd = params["wd"].astype(jnp.float32).reshape(Cc, K)
    bd = params["bd"].astype(jnp.float32).reshape(Cc, 1)
    a2 = jnp.asarray(params["a2"], jnp.float32).reshape(1, 1)
    ws = params["ws"].astype(compute_dtype)                    # (Cin, Cc) MXU operand
    bs = params["bs"].astype(jnp.float32).reshape(Cin, 1)

    cp_acc = pltpu.CompilerParams(dimension_semantics=("parallel", "arbitrary"),
                                  vmem_limit_bytes=vmem_limit_bytes)
    cp_par = pltpu.CompilerParams(dimension_semantics=("parallel", "parallel"),
                                  vmem_limit_bytes=vmem_limit_bytes)
    # TODO(synk): for B == 1 on v7x, add a 2-way core split of the T axis in stages
    # 1/2 (partial stats per core) so the second TensorCore is not idle.

    # ---- stage 1: conv1x1 + PReLU1 + gLN1 stats --------------------------------
    y1, s1sum, s1sq = pl.pallas_call(
        _in_kernel,
        out_shape=(jax.ShapeDtypeStruct((B, Cc, T), compute_dtype),
                   jax.ShapeDtypeStruct((B, 1, 128), jnp.float32),
                   jax.ShapeDtypeStruct((B, 1, 128), jnp.float32)),
        grid_spec=pltpu.PrefetchScalarGridSpec(
            num_scalar_prefetch=0,
            grid=(B, nT),
            in_specs=[
                pl.BlockSpec((1, Cin, tT), lambda b, t: (b, 0, t)),
                pl.BlockSpec((Cc, Cin), lambda b, t: (0, 0)),
                pl.BlockSpec((1, Cc, 1), lambda b, t: (b, 0, 0)),
                pl.BlockSpec((1, 1), lambda b, t: (0, 0)),
            ],
            out_specs=(
                pl.BlockSpec((1, Cc, tT), lambda b, t: (b, 0, t)),
                pl.BlockSpec((1, 1, 128), lambda b, t: (b, 0, 0)),
                pl.BlockSpec((1, 1, 128), lambda b, t: (b, 0, 0)),
            ),
        ),
        compiler_params=cp_acc,
    )(x, w1x, b1_eff, a1)

    scale1, shift1 = _stats_to_scale_shift(s1sum, s1sq, params["gamma1"],
                                           params["beta1"], Cc * T, eps)

    # ---- stage 2: gLN1 apply + depthwise conv + PReLU2 + gLN2 stats ------------
    mid = functools.partial(_mid_kernel, pad=pad, dilation=dilation, ksize=K, n_t=nT)
    y2, s2sum, s2sq = pl.pallas_call(
        mid,
        out_shape=(jax.ShapeDtypeStruct((B, Cc, T), compute_dtype),
                   jax.ShapeDtypeStruct((B, 1, 128), jnp.float32),
                   jax.ShapeDtypeStruct((B, 1, 128), jnp.float32)),
        grid_spec=pltpu.PrefetchScalarGridSpec(
            num_scalar_prefetch=0,
            grid=(B, nT),
            in_specs=[
                pl.BlockSpec((1, Cc, tT), lambda b, t: (b, 0, t)),
                # narrow halo blocks of the immediately adjacent columns (clamped
                # at the sequence boundary; masked to zero inside the kernel)
                pl.BlockSpec((1, Cc, halo_blk),
                             lambda b, t: (b, 0, jnp.maximum(t * hb_per_tile - 1, 0))),
                pl.BlockSpec((1, Cc, halo_blk),
                             lambda b, t: (b, 0, jnp.minimum((t + 1) * hb_per_tile,
                                                             n_hb - 1))),
                pl.BlockSpec((1, Cc, 1), lambda b, t: (b, 0, 0)),
                pl.BlockSpec((1, Cc, 1), lambda b, t: (b, 0, 0)),
                pl.BlockSpec((Cc, K), lambda b, t: (0, 0)),
                pl.BlockSpec((Cc, 1), lambda b, t: (0, 0)),
                pl.BlockSpec((1, 1), lambda b, t: (0, 0)),
            ],
            out_specs=(
                pl.BlockSpec((1, Cc, tT), lambda b, t: (b, 0, t)),
                pl.BlockSpec((1, 1, 128), lambda b, t: (b, 0, 0)),
                pl.BlockSpec((1, 1, 128), lambda b, t: (b, 0, 0)),
            ),
        ),
        compiler_params=cp_acc,
    )(y1, y1, y1, scale1, shift1, wd, bd, a2)

    scale2, shift2 = _stats_to_scale_shift(s2sum, s2sq, params["gamma2"],
                                           params["beta2"], Cc * T, eps)

    # ---- stage 3: gLN2 apply + 1x1 sconv + residual (fully parallel grid) ------
    out = pl.pallas_call(
        _out_kernel,
        out_shape=jax.ShapeDtypeStruct((B, Cin, T), x.dtype),
        grid_spec=pltpu.PrefetchScalarGridSpec(
            num_scalar_prefetch=0,
            grid=(B, nT),
            in_specs=[
                pl.BlockSpec((1, Cc, tT), lambda b, t: (b, 0, t)),
                pl.BlockSpec((1, Cc, 1), lambda b, t: (b, 0, 0)),
                pl.BlockSpec((1, Cc, 1), lambda b, t: (b, 0, 0)),
                pl.BlockSpec((Cin, Cc), lambda b, t: (0, 0)),
                pl.BlockSpec((Cin, 1), lambda b, t: (0, 0)),
                pl.BlockSpec((1, Cin, tT), lambda b, t: (b, 0, t)),
            ],
            out_specs=pl.BlockSpec((1, Cin, tT), lambda b, t: (b, 0, t)),
        ),
        compiler_params=cp_par,
    )(y2, scale2, shift2, ws, bs, x)

    return out


# ----------------------------------------------------------------------------
# Pure-JAX reference (mirrors the PyTorch module)
# ----------------------------------------------------------------------------
def _gln_reference(x, gamma, beta, eps):
    mean = jnp.mean(x, axis=(1, 2), keepdims=True)
    var = jnp.mean((x - mean) ** 2, axis=(1, 2), keepdims=True)
    return gamma[None] * (x - mean) / jnp.sqrt(var + eps) + beta[None]


def _reference_forward(x, spk, p, *, kernel_size, dilation, eps):
    B, Cin, T = x.shape
    Cc = p["w1"].shape[0]
    pad = dilation * (kernel_size - 1) // 2
    ref_rep = jnp.repeat(spk[:, :, None], T, axis=2)
    y = jnp.concatenate([x, ref_rep], axis=1)
    y = jnp.einsum("oc,bct->bot", p["w1"], y) + p["b1"][None, :, None]
    y = jnp.where(y >= 0, y, p["a1"] * y)
    y = _gln_reference(y, p["gamma1"], p["beta1"], eps)
    y = lax.conv_general_dilated(
        y, p["wd"][:, None, :], window_strides=(1,), padding=[(pad, pad)],
        rhs_dilation=(dilation,), dimension_numbers=("NCH", "OIH", "NCH"),
        feature_group_count=Cc)
    y = y + p["bd"][None, :, None]
    y = jnp.where(y >= 0, y, p["a2"] * y)
    y = _gln_reference(y, p["gamma2"], p["beta2"], eps)
    y = jnp.einsum("oc,bct->bot", p["ws"], y) + p["bs"][None, :, None]
    return y + x


if __name__ == "__main__":
    def make_params(key, Cin, Cspk, Cc, K):
        ks = jax.random.split(key, 10)
        return dict(
            w1=jax.random.normal(ks[0], (Cc, Cin + Cspk), jnp.float32) / jnp.sqrt(Cin + Cspk),
            b1=0.1 * jax.random.normal(ks[1], (Cc,), jnp.float32),
            a1=0.25,
            gamma1=1.0 + 0.1 * jax.random.normal(ks[2], (Cc, 1), jnp.float32),
            beta1=0.1 * jax.random.normal(ks[3], (Cc, 1), jnp.float32),
            wd=jax.random.normal(ks[4], (Cc, K), jnp.float32) / jnp.sqrt(K),
            bd=0.1 * jax.random.normal(ks[5], (Cc,), jnp.float32),
            a2=0.2,
            gamma2=1.0 + 0.1 * jax.random.normal(ks[6], (Cc, 1), jnp.float32),
            beta2=0.1 * jax.random.normal(ks[7], (Cc, 1), jnp.float32),
            ws=jax.random.normal(ks[8], (Cin, Cc), jnp.float32) / jnp.sqrt(Cc),
            bs=0.1 * jax.random.normal(ks[9], (Cin,), jnp.float32),
        )

    eps = 1e-5
    root = jax.random.PRNGKey(0)

    # --- Test 1: tiny single-tile shapes, f32 compute path (strict check) ------
    B, Cin, Cspk, Cc, T, K, dil = 2, 16, 8, 32, 16, 3, 1
    k1, k2, k3, k4 = jax.random.split(root, 4)
    x = jax.random.normal(k1, (B, Cin, T), jnp.float32)
    spk = jax.random.normal(k2, (B, Cspk), jnp.float32)
    p = make_params(k3, Cin, Cspk, Cc, K)
    out = jax.block_until_ready(
        tcn_block_spk_forward(x, spk, p, kernel_size=K, dilation=dil, eps=eps,
                              compute_dtype=jnp.float32))
    ref = _reference_forward(x, spk, p, kernel_size=K, dilation=dil, eps=eps)
    assert out.shape == (B, Cin, T)
    err1 = float(jnp.max(jnp.abs(out - ref)))
    assert jnp.allclose(out, ref, atol=1e-3, rtol=1e-3), f"f32 single-tile mismatch {err1}"

    # --- Test 2: multi-tile (halo path), dilation=2, f32 compute (strict check) -
    B, Cin, Cspk, Cc, T, K, dil = 2, 16, 8, 32, 512, 3, 2
    x2 = jax.random.normal(k4, (B, Cin, T), jnp.float32)
    spk2 = jax.random.normal(k2, (B, Cspk), jnp.float32)
    p2 = make_params(k3, Cin, Cspk, Cc, K)
    out2 = jax.block_until_ready(
        tcn_block_spk_forward(x2, spk2, p2, kernel_size=K, dilation=dil, eps=eps,
                              time_tile=128, compute_dtype=jnp.float32))
    ref2 = _reference_forward(x2, spk2, p2, kernel_size=K, dilation=dil, eps=eps)
    err2 = float(jnp.max(jnp.abs(out2 - ref2)))
    assert jnp.allclose(out2, ref2, atol=1e-3, rtol=1e-3), f"f32 tiled mismatch {err2}"

    # --- Test 3: same shapes, default bf16 fast path (sanity tolerance) ---------
    out3 = jax.block_until_ready(
        tcn_block_spk_forward(x2, spk2, p2, kernel_size=K, dilation=dil, eps=eps,
                              time_tile=128))
    err3 = float(jnp.max(jnp.abs(out3.astype(jnp.float32) - ref2)))
    assert jnp.allclose(out3.astype(jnp.float32), ref2, atol=1.5e-1, rtol=1e-1), \
        f"bf16 tiled mismatch {err3}"

    print("KERNEL_OK")
</pallas_src>

<mosaic_0001>
module attributes {stable_mosaic.version = 11 : i64} {
  func.func @_in_kernel(%arg0: i32, %arg1: i32, %arg2: memref<1x16x16xf32, #tpu.memory_space<vmem>>, %arg3: memref<32x16xf32, #tpu.memory_space<vmem>>, %arg4: memref<1x32x1xf32, #tpu.memory_space<vmem>>, %arg5: memref<1x1xf32, #tpu.memory_space<vmem>>, %arg6: memref<1x32x16xf32, #tpu.memory_space<vmem>>, %arg7: memref<1x1x128xf32, #tpu.memory_space<vmem>>, %arg8: memref<1x1x128xf32, #tpu.memory_space<vmem>>) attributes {dimension_semantics = [#tpu.dimension_semantics<parallel>, #tpu.dimension_semantics<arbitrary>], iteration_bounds = array<i64: 2, 1>, scalar_prefetch = 0 : i64, scratch_operands = 0 : i64, tpu.core_type = #tpu.core_type<tc>, window_params = [{transform_indices = @transform_0, window_bounds = array<i64: 1, 16, 16>}, {pipeline_mode = #tpu.pipeline_mode<synchronous>, transform_indices = @transform_1, window_bounds = array<i64: 32, 16>}, {transform_indices = @transform_2, window_bounds = array<i64: 1, 32, 1>}, {pipeline_mode = #tpu.pipeline_mode<synchronous>, transform_indices = @transform_3, window_bounds = array<i64: 1, 1>}, {transform_indices = @transform_4, window_bounds = array<i64: 1, 32, 16>}, {transform_indices = @transform_5, window_bounds = array<i64: 1, 1, 128>}, {transform_indices = @transform_6, window_bounds = array<i64: 1, 1, 128>}]} {
    %c0_i32 = arith.constant 0 : i32
    %0 = arith.cmpi eq, %arg1, %c0_i32 : i32
    %1 = arith.extui %0 : i1 to i32
    %c0_i32_0 = arith.constant 0 : i32
    %2 = arith.cmpi ne, %1, %c0_i32_0 : i32
    scf.if %2 {
      %cst_28 = arith.constant 0.000000e+00 : f32
      %37 = vector.broadcast %cst_28 : f32 to vector<1x1x128xf32>
      %c0_29 = arith.constant 0 : index
      %c0_30 = arith.constant 0 : index
      %c0_31 = arith.constant 0 : index
      %38 = vector.load %arg7[%c0_29, %c0_30, %c0_31] : memref<1x1x128xf32, #tpu.memory_space<vmem>>, vector<1x1x128xf32>
      tpu.vector_store %arg7[%c0_29, %c0_30, %c0_31], %37 {strides = array<i32>} : memref<1x1x128xf32, #tpu.memory_space<vmem>>, vector<1x1x128xf32>,
      %cst_32 = arith.constant 0.000000e+00 : f32
      %39 = vector.broadcast %cst_32 : f32 to vector<1x1x128xf32>
      %c0_33 = arith.constant 0 : index
      %c0_34 = arith.constant 0 : index
      %c0_35 = arith.constant 0 : index
      %40 = vector.load %arg8[%c0_33, %c0_34, %c0_35] : memref<1x1x128xf32, #tpu.memory_space<vmem>>, vector<1x1x128xf32>
      tpu.vector_store %arg8[%c0_33, %c0_34, %c0_35], %39 {strides = array<i32>} : memref<1x1x128xf32, #tpu.memory_space<vmem>>, vector<1x1x128xf32>,
    } else {
    }
    %c0 = arith.constant 0 : index
    %c0_1 = arith.constant 0 : index
    %c0_2 = arith.constant 0 : index
    %3 = vector.load %arg2[%c0, %c0_1, %c0_2] : memref<1x16x16xf32, #tpu.memory_space<vmem>>, vector<1x16x16xf32>
    %4 = vector.shape_cast %3 : vector<1x16x16xf32> to vector<16x16xf32>
    %c0_3 = arith.constant 0 : index
    %c0_4 = arith.constant 0 : index
    %5 = vector.load %arg3[%c0_3, %c0_4] : memref<32x16xf32, #tpu.memory_space<vmem>>, vector<32x16xf32>
    %cst = arith.constant dense<0.000000e+00> : vector<32x16xf32>
    %6 = tpu.matmul %5, %4, %cst {dimension_numbers = #tpu.dot_dimension_numbers<[1], [0], [0], [1], [0, 0, 1, 1], [], []>} : vector<32x16xf32>, vector<16x16xf32>, vector<32x16xf32> -> vector<32x16xf32>
    %c0_5 = arith.constant 0 : index
    %c0_6 = arith.constant 0 : index
    %c0_7 = arith.constant 0 : index
    %7 = vector.load %arg4[%c0_5, %c0_6, %c0_7] : memref<1x32x1xf32, #tpu.memory_space<vmem>>, vector<1x32x1xf32>
    %8 = vector.shape_cast %7 : vector<1x32x1xf32> to vector<32x1xf32>
    %9 = vector.broadcast %8 : vector<32x1xf32> to vector<32x16xf32>
    %10 = arith.addf %6, %9 : vector<32x16xf32>
    %c0_8 = arith.constant 0 : index
    %c0_9 = arith.constant 0 : index
    %11 = vector.load %arg5[%c0_8, %c0_9] : memref<1x1xf32, #tpu.memory_space<vmem>>, vector<1x1xf32>
    %cst_10 = arith.constant 0.000000e+00 : f32
    %12 = vector.broadcast %cst_10 : f32 to vector<32x16xf32>
    %13 = arith.cmpf oge, %10, %12 : vector<32x16xf32>
    %14 = vector.broadcast %11 : vector<1x1xf32> to vector<32x16xf32>
    %15 = arith.mulf %14, %10 : vector<32x16xf32>
    %16 = arith.select %13, %10, %15 : vector<32x16xi1>, vector<32x16xf32>
    %c0_11 = arith.constant 0 : index
    %c0_12 = arith.constant 0 : index
    %c0_13 = arith.constant 0 : index
    %17 = vector.load %arg6[%c0_11, %c0_12, %c0_13] : memref<1x32x16xf32, #tpu.memory_space<vmem>>, vector<1x32x16xf32>
    %18 = vector.shape_cast %17 : vector<1x32x16xf32> to vector<32x16xf32>
    %19 = vector.shape_cast %16 : vector<32x16xf32> to vector<1x32x16xf32>
    tpu.vector_store %arg6[%c0_11, %c0_12, %c0_13], %19 {strides = array<i32>} : memref<1x32x16xf32, #tpu.memory_space<vmem>>, vector<1x32x16xf32>,
    %c0_14 = arith.constant 0 : index
    %c0_15 = arith.constant 0 : index
    %c0_16 = arith.constant 0 : index
    %20 = vector.load %arg7[%c0_14, %c0_15, %c0_16] : memref<1x1x128xf32, #tpu.memory_space<vmem>>, vector<1x1x128xf32>
    %21 = vector.shape_cast %16 : vector<32x16xf32> to vector<1x32x16xf32>
    %cst_17 = arith.constant dense<0.000000e+00> : vector<1xf32>
    %22 = vector.multi_reduction <add>, %21, %cst_17 [1, 2] : vector<1x32x16xf32> to vector<1xf32>
    %23 = vector.shape_cast %22 : vector<1xf32> to vector<1x1x1xf32>
    %24 = vector.extract %23[0, 0, 0] : f32 from vector<1x1x1xf32>
    %25 = vector.broadcast %24 : f32 to vector<1x1x128xf32>
    %26 = arith.addf %20, %25 : vector<1x1x128xf32>
    %c0_18 = arith.constant 0 : index
    %c0_19 = arith.constant 0 : index
    %c0_20 = arith.constant 0 : index
    %27 = vector.load %arg7[%c0_18, %c0_19, %c0_20] : memref<1x1x128xf32, #tpu.memory_space<vmem>>, vector<1x1x128xf32>
    tpu.vector_store %arg7[%c0_18, %c0_19, %c0_20], %26 {strides = array<i32>} : memref<1x1x128xf32, #tpu.memory_space<vmem>>, vector<1x1x128xf32>,
    %c0_21 = arith.constant 0 : index
    %c0_22 = arith.constant 0 : index
    %c0_23 = arith.constant 0 : index
    %28 = vector.load %arg8[%c0_21, %c0_22, %c0_23] : memref<1x1x128xf32, #tpu.memory_space<vmem>>, vector<1x1x128xf32>
    %29 = arith.mulf %16, %16 : vector<32x16xf32>
    %30 = vector.shape_cast %29 : vector<32x16xf32> to vector<1x32x16xf32>
    %cst_24 = arith.constant dense<0.000000e+00> : vector<1xf32>
    %31 = vector.multi_reduction <add>, %30, %cst_24 [1, 2] : vector<1x32x16xf32> to vector<1xf32>
    %32 = vector.shape_cast %31 : vector<1xf32> to vector<1x1x1xf32>
    %33 = vector.extract %32[0, 0, 0] : f32 from vector<1x1x1xf32>
    %34 = vector.broadcast %33 : f32 to vector<1x1x128xf32>
    %35 = arith.addf %28, %34 : vector<1x1x128xf32>
    %c0_25 = arith.constant 0 : index
    %c0_26 = arith.constant 0 : index
    %c0_27 = arith.constant 0 : index
    %36 = vector.load %arg8[%c0_25, %c0_26, %c0_27] : memref<1x1x128xf32, #tpu.memory_space<vmem>>, vector<1x1x128xf32>
    tpu.vector_store %arg8[%c0_25, %c0_26, %c0_27], %35 {strides = array<i32>} : memref<1x1x128xf32, #tpu.memory_space<vmem>>, vector<1x1x128xf32>,
    return
  }
  func.func @transform_0(%arg0: i32, %arg1: i32) -> (i32, i32, i32) {
    %c0_i32 = arith.constant 0 : i32
    %c0_i32_0 = arith.constant 0 : i32
    return %arg0, %c0_i32, %arg1 : i32, i32, i32
  }
  func.func @transform_1(%arg0: i32, %arg1: i32) -> (i32, i32) {
    %c0_i32 = arith.constant 0 : i32
    %c0_i32_0 = arith.constant 0 : i32
    %c0_i32_1 = arith.constant 0 : i32
    return %c0_i32, %c0_i32_0 : i32, i32
  }
  func.func @transform_2(%arg0: i32, %arg1: i32) -> (i32, i32, i32) {
    %c0_i32 = arith.constant 0 : i32
    %c0_i32_0 = arith.constant 0 : i32
    %c0_i32_1 = arith.constant 0 : i32
    return %arg0, %c0_i32, %c0_i32_0 : i32, i32, i32
  }
  func.func @transform_3(%arg0: i32, %arg1: i32) -> (i32, i32) {
    %c0_i32 = arith.constant 0 : i32
    %c0_i32_0 = arith.constant 0 : i32
    %c0_i32_1 = arith.constant 0 : i32
    return %c0_i32, %c0_i32_0 : i32, i32
  }
  func.func @transform_4(%arg0: i32, %arg1: i32) -> (i32, i32, i32) {
    %c0_i32 = arith.constant 0 : i32
    %c0_i32_0 = arith.constant 0 : i32
    return %arg0, %c0_i32, %arg1 : i32, i32, i32
  }
  func.func @transform_5(%arg0: i32, %arg1: i32) -> (i32, i32, i32) {
    %c0_i32 = arith.constant 0 : i32
    %c0_i32_0 = arith.constant 0 : i32
    %c0_i32_1 = arith.constant 0 : i32
    return %arg0, %c0_i32, %c0_i32_0 : i32, i32, i32
  }
  func.func @transform_6(%arg0: i32, %arg1: i32) -> (i32, i32, i32) {
    %c0_i32 = arith.constant 0 : i32
    %c0_i32_0 = arith.constant 0 : i32
    %c0_i32_1 = arith.constant 0 : i32
    return %arg0, %c0_i32, %c0_i32_0 : i32, i32, i32
  }
}

</mosaic_0001>

<llo_original>
// kernel: tpu_custom_call.1
$region0: #{tpu_custom_call.1}
  #allocation0 [shape = 'u32[]', space=smem, size = 0x4, offset = 0x4, fixed_abs, tag = 'smem constant byte address 0x4 - core index']
  #allocation1 [shape = 'u32[144,128]{1,0:T(1,128)}', space=vmem, size = 0x12000, scoped, tag = 'internal scratch']
  #allocation2 [shape = 'f32[1,1]{1,0:T(1,128)S(1)}', space=vmem, size = 0x200, scoped, tag = 'scoped memory for tpu_custom_call.1']
  %s0 = inlined_call_operand.vmem [shape: f32[2,16,16], index: 0, kind: input, shape index: {}]
  %s1 = inlined_call_operand.vmem [shape: f32[32,16], index: 1, kind: input, shape index: {}]
  %s2 = inlined_call_operand.vmem [shape: f32[2,32,1], index: 2, kind: input, shape index: {}]
  %s3 = inlined_call_operand.<no memory space> [shape: f32[1,1], index: 3, kind: input, shape index: {}]
  %s4 = inlined_call_operand.vmem [shape: f32[2,32,16], index: 4, kind: output, shape index: {0}]
  %s5 = inlined_call_operand.hbm [shape: f32[2,1,128], index: 5, kind: output, shape index: {1}]
  %s6 = inlined_call_operand.hbm [shape: f32[2,1,128], index: 6, kind: output, shape index: {2}]
  %7 = xla_tuple %s4, %s5, %s6
  %s8 = sld [smem:[#allocation0]]
  $region69: #{tpu_custom_call.1} parent=0
    _
  %s10 = ssub.s32 1, %s8
  %s11 = scalar_select 0, %s10, %s8
  %v12 = vstv %s3
  %13 = vst [vmem:[#allocation2] sm:$0x1] %v12
  $region1: #{tpu_custom_call.1} parent=0
    #allocation3 [shape = 'u8[1024]{0}', space=vmem, size = 0x400, scoped, tag = 'output window, operand 1']
    #allocation4 [shape = 's32[2]{0}', space=sflag, size = 0x8, scoped, tag = 'scoped memory for tpu_custom_call.1']
    #allocation5 [shape = 'u8[1024]{0}', space=vmem, size = 0x400, scoped, tag = 'output window, operand 2']
    #allocation6 [shape = 's32[2]{0}', space=sflag, size = 0x8, scoped, tag = 'scoped memory for tpu_custom_call.1']
    %14 = vsyncpa [#allocation4], 0
    %s15 = scalar_lea.sflag [#allocation4], 1
    %16 = vsyncpa %s15, 0
    %17 = vsyncpa [#allocation6], 0
    %s18 = scalar_lea.sflag [#allocation6], 1
    %19 = vsyncpa %s18, 0
    loop: start=0, step=1, limit=4
    $region2: #{tpu_custom_call.1} parent=1 // loop_pre_header
      _
    $region3: #{tpu_custom_call.1} parent=1 // loop_header
      %s21 = sphi 0, %s25
      %p22 = scmp.ge.s32.totalorder %s21, 4
      %s28 = sphi 0, %s40
      %s29 = sphi 0, %s36
      %s30 = sphi 0, %s28
      %s31 = sphi 0, %s29
      %s32 = sphi 0, %s30
      %s33 = sphi 0, %s31
      %s45 = sphi 0, %s47
      %s48 = sphi 0, %s45
      %s49 = sphi 0, %s48
      %s65 = sphi 0, %s49
      %s69 = sphi 0, %s69
      %s71 = sphi 0, %s69
      %s72 = sphi 0, %s71
      %s86 = sphi 0, %s72
      %s92 = sphi 0, %s94
      %s95 = sphi 0, %s92
      %s96 = sphi 0, %s95
      %s112 = sphi 0, %s96
      %s116 = sphi 0, %s116
      %s118 = sphi 0, %s116
      %s119 = sphi 0, %s118
      %s133 = sphi 0, %s119
      %s141 = sphi 0, %s143
      %s144 = sphi 0, %s141
      %s145 = sphi 0, %s144
      %s161 = sphi 0, %s145
      %s167 = sphi 0, %s169
      %s170 = sphi 0, %s167
      %s171 = sphi 0, %s170
      %s187 = sphi 0, %s171
      %s193 = sphi 0, %s195
      %s196 = sphi 0, %s193
      %s197 = sphi 0, %s196
      %s213 = sphi 0, %s197
    $region4: #{tpu_custom_call.1} parent=1 // loop_header_branch
      %24 = sbr.rel (%p22) target = $region8
    $region5: #{tpu_custom_call.1} parent=1 // loop_body
      %s26 = ssub.s32 %s21, 1
      %s27 = ssub.s32 %s21, 2
      %s34 = sadd.s32 1, %s29
      %p35 = scmp.ge.s32.totalorder %s34, 1
      %s36 = scalar_select %p35, 0, %s34
      %s37 = sadd.s32 1, %s28
      %s38 = scalar_select %p35, %s37, %s28
      %p39 = scmp.ge.s32.totalorder %s38, 2
      %s40 = scalar_select %p39, 0, %s38
      %s41 = ssub.s32 %s28, %s40
      %s42 = ssub.s32 %s29, %s36
      %s43 = sor.u32 %s41, %s42
      %p44 = scmp.eq.s32.totalorder %s43, 0
      %s46 = sadd.s32 %s45, 1
      %s47 = scalar_select %p44, %s45, %s46
      %p50 = pneg %p44
      %p51 = scmp.eq.s32.totalorder %s21, 1
      %p52 = por %p50, %p51
      %p53 = scmp.ne.s32.totalorder %s45, %s48
      %p54 = scmp.eq.s32.totalorder %s21, 0
      %p55 = por %p53, %p54
      %p56 = scmp.ne.s32.totalorder %s45, %s48
      %p57 = scmp.eq.s32.totalorder %s26, 1
      %p58 = por %p56, %p57
      %p59 = scmp.ne.s32.totalorder %s48, %s49
      %p60 = scmp.eq.s32.totalorder %s26, 0
      %p61 = por %p59, %p60
      %p62 = scmp.ne.s32.totalorder %s48, %s49
      %p63 = scmp.eq.s32.totalorder %s27, 1
      %p64 = por %p62, %p63
      %p66 = scmp.ne.s32.totalorder %s49, %s65
      %p67 = scmp.eq.s32.totalorder %s27, 0
      %p68 = por %p66, %p67
      %s70 = sadd.s32 %s69, 1
      %p73 = scmp.eq.s32.totalorder %s21, 1
      %p74 = scmp.ne.s32.totalorder %s69, %s71
      %p75 = scmp.eq.s32.totalorder %s21, 0
      %p76 = por %p74, %p75
      %p77 = scmp.ne.s32.totalorder %s69, %s71
      %p78 = scmp.eq.s32.totalorder %s26, 1
      %p79 = por %p77, %p78
      %p80 = scmp.ne.s32.totalorder %s71, %s72
      %p81 = scmp.eq.s32.totalorder %s26, 0
      %p82 = por %p80, %p81
      %p83 = scmp.ne.s32.totalorder %s71, %s72
      %p84 = scmp.eq.s32.totalorder %s27, 1
      %p85 = por %p83, %p84
      %p87 = scmp.ne.s32.totalorder %s72, %s86
      %p88 = scmp.eq.s32.totalorder %s27, 0
      %p89 = por %p87, %p88
      %s90 = ssub.s32 %s28, %s40
      %p91 = scmp.eq.s32.totalorder %s90, 0
      %s93 = sadd.s32 %s92, 1
      %s94 = scalar_select %p91, %s92, %s93
      %p97 = pneg %p91
      %p98 = scmp.eq.s32.totalorder %s21, 1
      %p99 = por %p97, %p98
      %p100 = scmp.ne.s32.totalorder %s92, %s95
      %p101 = scmp.eq.s32.totalorder %s21, 0
      %p102 = por %p100, %p101
      %p103 = scmp.ne.s32.totalorder %s92, %s95
      %p104 = scmp.eq.s32.totalorder %s26, 1
      %p105 = por %p103, %p104
      %p106 = scmp.ne.s32.totalorder %s95, %s96
      %p107 = scmp.eq.s32.totalorder %s26, 0
      %p108 = por %p106, %p107
      %p109 = scmp.ne.s32.totalorder %s95, %s96
      %p110 = scmp.eq.s32.totalorder %s27, 1
      %p111 = por %p109, %p110
      %p113 = scmp.ne.s32.totalorder %s96, %s112
      %p114 = scmp.eq.s32.totalorder %s27, 0
      %p115 = por %p113, %p114
      %s117 = sadd.s32 %s116, 1
      %p120 = scmp.eq.s32.totalorder %s21, 1
      %p121 = scmp.ne.s32.totalorder %s116, %s118
      %p122 = scmp.eq.s32.totalorder %s21, 0
      %p123 = por %p121, %p122
      %p124 = scmp.ne.s32.totalorder %s116, %s118
      %p125 = scmp.eq.s32.totalorder %s26, 1
      %p126 = por %p124, %p125
      %p127 = scmp.ne.s32.totalorder %s118, %s119
      %p128 = scmp.eq.s32.totalorder %s26, 0
      %p129 = por %p127, %p128
      %p130 = scmp.ne.s32.totalorder %s118, %s119
      %p131 = scmp.eq.s32.totalorder %s27, 1
      %p132 = por %p130, %p131
      %p134 = scmp.ne.s32.totalorder %s119, %s133
      %p135 = scmp.eq.s32.totalorder %s27, 0
      %p136 = por %p134, %p135
      %s137 = ssub.s32 %s28, %s40
      %s138 = ssub.s32 %s29, %s36
      %s139 = sor.u32 %s137, %s138
      %p140 = scmp.eq.s32.totalorder %s139, 0
      %s142 = sadd.s32 %s141, 1
      %s143 = scalar_select %p140, %s141, %s142
      %p146 = pneg %p140
      %p147 = scmp.eq.s32.totalorder %s21, 1
      %p148 = por %p146, %p147
      %p149 = scmp.ne.s32.totalorder %s141, %s144
      %p150 = scmp.eq.s32.totalorder %s21, 0
      %p151 = por %p149, %p150
      %p152 = scmp.ne.s32.totalorder %s141, %s144
      %p153 = scmp.eq.s32.totalorder %s26, 1
      %p154 = por %p152, %p153
      %p155 = scmp.ne.s32.totalorder %s144, %s145
      %p156 = scmp.eq.s32.totalorder %s26, 0
      %p157 = por %p155, %p156
      %p158 = scmp.ne.s32.totalorder %s144, %s145
      %p159 = scmp.eq.s32.totalorder %s27, 1
      %p160 = por %p158, %p159
      %p162 = scmp.ne.s32.totalorder %s145, %s161
      %p163 = scmp.eq.s32.totalorder %s27, 0
      %p164 = por %p162, %p163
      %s165 = ssub.s32 %s28, %s40
      %p166 = scmp.eq.s32.totalorder %s165, 0
      %s168 = sadd.s32 %s167, 1
      %s169 = scalar_select %p166, %s167, %s168
      %p172 = pneg %p166
      %p173 = scmp.eq.s32.totalorder %s21, 1
      %p174 = por %p172, %p173
      %p175 = scmp.ne.s32.totalorder %s167, %s170
      %p176 = scmp.eq.s32.totalorder %s21, 0
      %p177 = por %p175, %p176
      %p178 = scmp.ne.s32.totalorder %s167, %s170
      %p179 = scmp.eq.s32.totalorder %s26, 1
      %p180 = por %p178, %p179
      %p181 = scmp.ne.s32.totalorder %s170, %s171
      %p182 = scmp.eq.s32.totalorder %s26, 0
      %p183 = por %p181, %p182
      %p184 = scmp.ne.s32.totalorder %s170, %s171
      %p185 = scmp.eq.s32.totalorder %s27, 1
      %p186 = por %p184, %p185
      %p188 = scmp.ne.s32.totalorder %s171, %s187
      %p189 = scmp.eq.s32.totalorder %s27, 0
      %p190 = por %p188, %p189
      %s191 = ssub.s32 %s28, %s40
      %p192 = scmp.eq.s32.totalorder %s191, 0
      %s194 = sadd.s32 %s193, 1
      %s195 = scalar_select %p192, %s193, %s194
      %p198 = pneg %p192
      %p199 = scmp.eq.s32.totalorder %s21, 1
      %p200 = por %p198, %p199
      %p201 = scmp.ne.s32.totalorder %s193, %s196
      %p202 = scmp.eq.s32.totalorder %s21, 0
      %p203 = por %p201, %p202
      %p204 = scmp.ne.s32.totalorder %s193, %s196
      %p205 = scmp.eq.s32.totalorder %s26, 1
      %p206 = por %p204, %p205
      %p207 = scmp.ne.s32.totalorder %s196, %s197
      %p208 = scmp.eq.s32.totalorder %s26, 0
      %p209 = por %p207, %p208
      %p210 = scmp.ne.s32.totalorder %s196, %s197
      %p211 = scmp.eq.s32.totalorder %s27, 1
      %p212 = por %p210, %p211
      %p214 = scmp.ne.s32.totalorder %s197, %s213
      %p215 = scmp.eq.s32.totalorder %s27, 0
      %p216 = por %p214, %p215
      %p217 = scmp.le.s32.totalorder 1, %s21
      %p218 = scmp.lt.s32.totalorder %s21, 3
      %p219 = pnand %p217, %p218
      %p220 = pneg %p219
      // Predicated region
      $region9: #{tpu_custom_call.1} parent=5 // pred_check
        _
      $region10: #{tpu_custom_call.1} parent=5 // pred_check_branch
        %222 = sbr.rel (%p219) target = $region12
      $region11: #{tpu_custom_call.1} parent=5 // pred_region
        %s223 = ssub.s32 %s21, 1
        // Predicated region
        $region13: #{tpu_custom_call.1} parent=11 // pred_check
          %p224 = pneg %p82
        $region14: #{tpu_custom_call.1} parent=11 // pred_check_branch
          %226 = sbr.rel (%p224) target = $region16
        $region15: #{tpu_custom_call.1} parent=11 // pred_region
          _
        $region16: #{tpu_custom_call.1} parent=11 // pred_fallthru
          _
        // Predicated region
        $region17: #{tpu_custom_call.1} parent=11 // pred_check
          %p227 = pneg %p129
        $region18: #{tpu_custom_call.1} parent=11 // pred_check_branch
          %229 = sbr.rel (%p227) target = $region20
        $region19: #{tpu_custom_call.1} parent=11 // pred_region
          _
        $region20: #{tpu_custom_call.1} parent=11 // pred_fallthru
          _
      $region12: #{tpu_custom_call.1} parent=5 // pred_fallthru
        _
      %p230 = scmp.lt.s32.totalorder %s21, 2
      // Predicated region
      $region21: #{tpu_custom_call.1} parent=5 // pred_check
        %p231 = pneg %p230
      $region22: #{tpu_custom_call.1} parent=5 // pred_check_branch
        %233 = sbr.rel (%p231) target = $region24
      $region23: #{tpu_custom_call.1} parent=5 // pred_region
        // Predicated region
        $region25: #{tpu_custom_call.1} parent=23 // pred_check
          %p234 = pneg %p55
        $region26: #{tpu_custom_call.1} parent=23 // pred_check_branch
          %236 = sbr.rel (%p234) target = $region28
        $region27: #{tpu_custom_call.1} parent=23 // pred_region
          %p237 = scmp.lt.s32.totalorder %s28, 1
          %s238 = scalar_select %p237, %s28, 1
          %p239 = scmp.lt.s32.totalorder %s29, 0
          %s240 = scalar_select %p239, %s29, 0
          %s241 = smul.addr %s238, 2
          %s242 = sadd.s32 %s240, %s241
          %s243 = smul.addr %s242, 8
          %s244 = scalar_lea.vmem %s0, %s243
        $region28: #{tpu_custom_call.1} parent=23 // pred_fallthru
          _
        // Predicated region
        $region29: #{tpu_custom_call.1} parent=23 // pred_check
          %p245 = pneg %p102
        $region30: #{tpu_custom_call.1} parent=23 // pred_check_branch
          %247 = sbr.rel (%p245) target = $region32
        $region31: #{tpu_custom_call.1} parent=23 // pred_region
          %p248 = scmp.lt.s32.totalorder %s28, 1
          %s249 = scalar_select %p248, %s28, 1
          %s250 = smul.addr %s249, 4
          %s251 = smul.addr %s250, 8
          %s252 = scalar_lea.vmem %s2, %s251
        $region32: #{tpu_custom_call.1} parent=23 // pred_fallthru
          _
      $region24: #{tpu_custom_call.1} parent=5 // pred_fallthru
        _
      %p253 = scmp.le.s32.totalorder 1, %s21
      %p254 = scmp.lt.s32.totalorder %s21, 3
      %p255 = pnand %p253, %p254
      %p256 = pneg %p255
      // Predicated region
      $region33: #{tpu_custom_call.1} parent=5 // pred_check
        _
      $region34: #{tpu_custom_call.1} parent=5 // pred_check_branch
        %258 = sbr.rel (%p255) target = $region36
      $region35: #{tpu_custom_call.1} parent=5 // pred_region
        %s259 = ssub.s32 %s21, 1
        %p260 = scmp.lt.s32.totalorder %s30, 1
        %s261 = scalar_select %p260, %s30, 1
        %p262 = scmp.lt.s32.totalorder %s31, 0
        %s263 = scalar_select %p262, %s31, 0
        %s264 = smul.addr %s261, 2
        %s265 = sadd.s32 %s263, %s264
        %s266 = smul.addr %s265, 8
        %s267 = scalar_lea.vmem %s0, %s266
        %p268 = pneg %p61
        %p269 = pneg %p58
        %p270 = pneg %p82
        %p271 = pneg %p79
        %p272 = scmp.lt.s32.totalorder %s30, 1
        %s273 = scalar_select %p272, %s30, 1
        %s274 = smul.addr %s273, 4
        %s275 = smul.addr %s274, 8
        %s276 = scalar_lea.vmem %s2, %s275
        %p277 = pneg %p108
        %p278 = pneg %p105
        %p279 = pneg %p129
        %p280 = pneg %p126
        %p281 = pneg %p157
        %p282 = pneg %p154
        %p283 = scmp.lt.s32.totalorder %s30, 1
        %s284 = scalar_select %p283, %s30, 1
        %p285 = scmp.lt.s32.totalorder %s31, 0
        %s286 = scalar_select %p285, %s31, 0
        %s287 = smul.addr %s284, 4
        %s288 = sadd.s32 %s286, %s287
        %s289 = smul.addr %s288, 8
        %s290 = scalar_lea.vmem %s4, %s289
        %p291 = pneg %p183
        %p292 = pneg %p180
        %s293 = sand.u32 %s170, 1
        %s294 = scalar_lea.sflag [#allocation4], %s293
        %s295 = sand.u32 %s170, 1
        %s296 = scalar_lea.vmem [#allocation3], %s295
        %p297 = pneg %p209
        %p298 = pneg %p206
        %s299 = sand.u32 %s196, 1
        %s300 = scalar_lea.sflag [#allocation6], %s299
        %s301 = sand.u32 %s196, 1
        %s302 = scalar_lea.vmem [#allocation5], %s301
        %p303 = scmp.lt.s32.totalorder %s30, 1
        %s304 = scalar_select %p303, %s30, 1
        %p305 = scmp.lt.s32.totalorder %s31, 0
        %s306 = scalar_select %p305, %s31, 0
        %s307 = smul.addr %s304, 2
        %s308 = sadd.s32 %s306, %s307
        %s309 = smul.addr %s308, 8
        %s310 = scalar_lea.vmem %s0, %s309
        %p311 = scmp.lt.s32.totalorder %s30, 1
        %s312 = scalar_select %p311, %s30, 1
        %s313 = smul.addr %s312, 4
        %s314 = smul.addr %s313, 8
        %s315 = scalar_lea.vmem %s2, %s314
        %p316 = scmp.lt.s32.totalorder %s30, 1
        %s317 = scalar_select %p316, %s30, 1
        %p318 = scmp.lt.s32.totalorder %s31, 0
        %s319 = scalar_select %p318, %s31, 0
        %s320 = smul.addr %s317, 4
        %s321 = sadd.s32 %s319, %s320
        %s322 = smul.addr %s321, 8
        %s323 = scalar_lea.vmem %s4, %s322
        %p324 = scmp.eq.s32.totalorder %s31, 0
        // Predicated region
        $region37: #{tpu_custom_call.1} parent=35 // pred_check
          %p325 = pneg %p324
        $region38: #{tpu_custom_call.1} parent=35 // pred_check_branch
          %327 = sbr.rel (%p325) target = $region40
        $region39: #{tpu_custom_call.1} parent=35 // pred_region
          %328 = vst [vmem:[%s296] sm:$0x1] 0.0
          %329 = vst [vmem:[%s302] sm:$0x1] 0.0
        $region40: #{tpu_custom_call.1} parent=35 // pred_fallthru
          _
        %v330 = vld [vmem:[%s310] sm:$0xff]
        %v331 = vld [vmem:[%s310 + $0x8] sm:$0xff]
        %v332 = vld [vmem:[%s1] sm:$0xff]
        %v333 = vld [vmem:[%s1 + $0x8] sm:$0xff]
        %v334 = vld [vmem:[%s1 + $0x10] sm:$0xff]
        %v335 = vld [vmem:[%s1 + $0x18] sm:$0xff]
        %v336 = vld [vmem:[%s315] sm:$0xff]
        %v337 = vld [vmem:[%s315 + $0x8] sm:$0xff]
        %v338 = vld [vmem:[%s315 + $0x10] sm:$0xff]
        %v339 = vld [vmem:[%s315 + $0x18] sm:$0xff]
        %341 = vset.pattern.permute.xlu0 0
        %342 = vperm.xlu0 %341, %v336
        %v343 = vpop.permute.xlu0 %342
        %346 = vset.pattern.permute.xlu0 0
        %347 = vperm.xlu0 %346, %v337
        %v348 = vpop.permute.xlu0 %347
        %351 = vset.pattern.permute.xlu0 0
        %352 = vperm.xlu0 %351, %v338
        %v353 = vpop.permute.xlu0 %352
        %356 = vset.pattern.permute.xlu0 0
        %357 = vperm.xlu0 %356, %v339
        %v358 = vpop.permute.xlu0 %357
        %vm360 = vcmask 130048
        %v362 = vsel %vm360, %v332, 0
        %v365 = vsel %vm360, %v333, 0
        %v368 = vsel %vm360, %v334, 0
        %v371 = vsel %vm360, %v335, 0
        %373 = vmatprep.subr.mxu0 0.0
        %374 = vmatpush1.msra.mxu0 %v330
        %375 = vmatprep.subr.mxu0 0.0
        %376 = vmatpush1.msra.mxu0 %v331
        %377 = vmatprep.subr.mxu0 0.0
        %378 = vmatpush1.msra.mxu0 0.0
        %379 = vmatprep.subr.mxu0 0.0
        %380 = vmatpush1.msra.mxu0 0.0
        %381 = vmatprep.subr.mxu0 0.0
        %382 = vmatpush1.msra.mxu0 0.0
        %383 = vmatprep.subr.mxu0 0.0
        %384 = vmatpush1.msra.mxu0 0.0
        %385 = vmatprep.subr.mxu0 0.0
        %386 = vmatpush1.msra.mxu0 0.0
        %387 = vmatprep.subr.mxu0 0.0
        %388 = vmatpush1.msra.mxu0 0.0
        %389 = vmatprep.subr.mxu0 0.0
        %390 = vmatpush1.msra.mxu0 0.0
        %391 = vmatprep.subr.mxu0 0.0
        %392 = vmatpush1.msra.mxu0 0.0
        %393 = vmatprep.subr.mxu0 0.0
        %394 = vmatpush1.msra.mxu0 0.0
        %395 = vmatprep.subr.mxu0 0.0
        %396 = vmatpush1.msra.mxu0 0.0
        %397 = vmatprep.subr.mxu0 0.0
        %398 = vmatpush1.msra.mxu0 0.0
        %399 = vmatprep.subr.mxu0 0.0
        %400 = vmatpush1.msra.mxu0 0.0
        %401 = vmatprep.subr.mxu0 0.0
        %402 = vmatpush1.msra.mxu0 0.0
        %403 = vmatprep.subr.mxu0 0.0
        %404 = vmatpush1.msra.mxu0 0.0
        %405 = vmatprep.subr.mxu0 0.0
        %406 = vmatpush1.msra.mxu0 0.0
        %407 = vmatprep.subr.mxu0 0.0
        %408 = vmatpush1.msra.mxu0 0.0
        %409 = vmatprep.subr.mxu0 0.0
        %410 = vmatpush1.msra.mxu0 0.0
        %411 = vmatprep.subr.mxu0 0.0
        %412 = vmatpush1.msra.mxu0 0.0
        %413 = vmatprep.subr.mxu0 0.0
        %414 = vmatpush1.msra.mxu0 0.0
        %415 = vmatprep.subr.mxu0 0.0
        %416 = vmatpush1.msra.mxu0 0.0
        %417 = vmatprep.subr.mxu0 0.0
        %418 = vmatpush1.msra.mxu0 0.0
        %419 = vmatprep.subr.mxu0 0.0
        %420 = vmatpush1.msra.mxu0 0.0
        %421 = vmatprep.subr.mxu0 0.0
        %422 = vmatpush1.msra.mxu0 0.0
        %423 = vmatprep.subr.mxu0 0.0
        %424 = vmatpush1.msra.mxu0 0.0
        %425 = vmatprep.subr.mxu0 0.0
        %426 = vmatpush1.msra.mxu0 0.0
        %427 = vmatprep.subr.mxu0 0.0
        %428 = vmatpush1.msra.mxu0 0.0
        %429 = vmatprep.subr.mxu0 0.0
        %430 = vmatpush1.msra.mxu0 0.0
        %431 = vmatprep.subr.mxu0 0.0
        %432 = vmatpush1.msra.mxu0 0.0
        %433 = vmatprep.subr.mxu0 0.0
        %434 = vmatpush1.msra.mxu0 0.0
        %435 = vmatprep.subr.mxu0 0.0
        %436 = vmatpush1.msra.mxu0 0.0
        %437 = vmatprep.mubr.f32.mxu0 0.0
        %438 = vmatmul.mubr.f32.gmra.mrb[0].mxu0 %v362
        %v439 = vpop.f32.mrb[0].mxu0
        %v440 = vadd.f32 %v343, %v439
        %v441 = vpop.f32.mrb[0].mxu0
        %442 = vmatprep.mubr.f32.mxu0 0.0
        %443 = vmatmul.mubr.f32.gmra.mrb[0].mxu0 %v365
        %v444 = vpop.f32.mrb[0].mxu0
        %v445 = vadd.f32 %v348, %v444
        %v446 = vpop.f32.mrb[0].mxu0
        %447 = vmatprep.mubr.f32.mxu0 0.0
        %448 = vmatmul.mubr.f32.gmra.mrb[0].mxu0 %v368
        %v449 = vpop.f32.mrb[0].mxu0
        %v450 = vadd.f32 %v353, %v449
        %v451 = vpop.f32.mrb[0].mxu0
        %452 = vmatprep.mubr.f32.mxu0 0.0
        %453 = vmatmul.mubr.f32.gmra.mrb[0].mxu0 %v371
        %v454 = vpop.f32.mrb[0].mxu0
        %v455 = vadd.f32 %v358, %v454
        %v456 = vpop.f32.mrb[0].mxu0
        %457 = vdwg.mxu0
        %v458 = vld [vmem:[#allocation2] sm:$0x1]
        %vm459 = vcmp.ge.f32.partialorder %v440, 0.0
        %vm460 = vcmp.ge.f32.partialorder %v445, 0.0
        %vm461 = vcmp.ge.f32.partialorder %v450, 0.0
        %vm462 = vcmp.ge.f32.partialorder %v455, 0.0
        %v464 = vlaneseq
        %v465 = vshrl.u32 %v464, 7
        %v466 = vsub.s32 0, %v465
        %v467 = vrot.slane %v458, %v466
        %468 = vset.pattern.permute.xlu0 0
        %469 = vperm.xlu0 %468, %v467
        %v470 = vpop.permute.xlu0 %469
        %v472 = vmul.f32 %v470, %v440
        %v473 = vmul.f32 %v470, %v445
        %v474 = vmul.f32 %v470, %v450
        %v475 = vmul.f32 %v470, %v455
        %v476 = vsel %vm459, %v440, %v472
        %v477 = vsel %vm460, %v445, %v473
        %v478 = vsel %vm461, %v450, %v474
        %v479 = vsel %vm462, %v455, %v475
        %480 = vst.msk [vmem:[%s323] sm:$0xff] %vm360, %v476
        %481 = vst.msk [vmem:[%s323 + $0x8] sm:$0xff] %vm360, %v477
        %482 = vst.msk [vmem:[%s323 + $0x10] sm:$0xff] %vm360, %v478
        %483 = vst.msk [vmem:[%s323 + $0x18] sm:$0xff] %vm360, %v479
        %v484 = vld [vmem:[%s296] sm:$0x1]
        %v485 = vsel %vm360, %v476, 0.0
        %v486 = vsel %vm360, %v477, 0.0
        %v487 = vadd.f32 %v485, %v486
        %v488 = vsel %vm360, %v478, 0.0
        %v489 = vadd.f32 %v487, %v488
        %v490 = vsel %vm360, %v479, 0.0
        %v491 = vadd.f32 %v489, %v490
        %492 = vadd.xlane.f32.xlu0 %v491
        %v493 = vpop.xlane.xlu0 %492
        %v494 = vrot.slane %v493, 4
        %v495 = vadd.f32 %v493, %v494
        %v496 = vrot.slane %v495, 2
        %v497 = vadd.f32 %v495, %v496
        %v498 = vrot.slane %v497, 1
        %v499 = vadd.f32 %v497, %v498
        %s500 = vtos %v499
        %v501 = vstv %s500
        %v502 = vadd.f32 %v484, %v501
        %503 = vst [vmem:[%s296] sm:$0x1] %v502
        %v504 = vld [vmem:[%s302] sm:$0x1]
        %v505 = vmul.f32 %v476, %v476
        %v506 = vmul.f32 %v477, %v477
        %v507 = vmul.f32 %v478, %v478
        %v508 = vmul.f32 %v479, %v479
        %v509 = vsel %vm360, %v505, 0.0
        %v510 = vsel %vm360, %v506, 0.0
        %v511 = vadd.f32 %v509, %v510
        %v512 = vsel %vm360, %v507, 0.0
        %v513 = vadd.f32 %v511, %v512
        %v514 = vsel %vm360, %v508, 0.0
        %v515 = vadd.f32 %v513, %v514
        %516 = vadd.xlane.f32.xlu0 %v515
        %v517 = vpop.xlane.xlu0 %516
        %v518 = vrot.slane %v517, 4
        %v519 = vadd.f32 %v517, %v518
        %v520 = vrot.slane %v519, 2
        %v521 = vadd.f32 %v519, %v520
        %v522 = vrot.slane %v521, 1
        %v523 = vadd.f32 %v521, %v522
        %s524 = vtos %v523
        %v525 = vstv %s524
        %v526 = vadd.f32 %v504, %v525
        %527 = vst [vmem:[%s302] sm:$0x1] %v526
        %p528 = scmp.lt.s32.totalorder %s30, 1
        %s529 = scalar_select %p528, %s30, 1
        %p530 = scmp.lt.s32.totalorder %s31, 0
        %s531 = scalar_select %p530, %s31, 0
        %s532 = smul.addr %s529, 4
        %s533 = sadd.s32 %s531, %s532
        %s534 = smul.addr %s533, 8
        %s535 = scalar_lea.vmem %s4, %s534
        %s536 = sand.u32 %s170, 1
        %s537 = scalar_lea.sflag [#allocation4], %s536
        %s538 = sand.u32 %s170, 1
        %s539 = scalar_lea.vmem [#allocation3], %s538
        %s540 = sand.u32 %s196, 1
        %s541 = scalar_lea.sflag [#allocation6], %s540
        %s542 = sand.u32 %s196, 1
        %s543 = scalar_lea.vmem [#allocation5], %s542
        // Predicated region
        $region41: #{tpu_custom_call.1} parent=35 // pred_check
          %p544 = pneg %p154
        $region42: #{tpu_custom_call.1} parent=35 // pred_check_branch
          %546 = sbr.rel (%p544) target = $region44
        $region43: #{tpu_custom_call.1} parent=35 // pred_region
          _
        $region44: #{tpu_custom_call.1} parent=35 // pred_fallthru
          _
        // Predicated region
        $region45: #{tpu_custom_call.1} parent=35 // pred_check
          %p547 = pneg %p180
        $region46: #{tpu_custom_call.1} parent=35 // pred_check_branch
          %549 = sbr.rel (%p547) target = $region48
        $region47: #{tpu_custom_call.1} parent=35 // pred_region
          %s551 = ssub.s32 16, 16
          %552 = vsyncadd %s537, %s551
          %s553 = smul.addr %s30, 16
          %s554 = scalar_lea.hbm %s5, %s553
          %s556 = sshll.u32 %s539, 4
          %s557 = int_to_ptr.vmem [resolvable:$true] %s556
          %559 = dma.vmem_to_hbm [thread:$0]  %s557, 16, %s554, %s537
        $region48: #{tpu_custom_call.1} parent=35 // pred_fallthru
          _
        // Predicated region
        $region49: #{tpu_custom_call.1} parent=35 // pred_check
          %p560 = pneg %p206
        $region50: #{tpu_custom_call.1} parent=35 // pred_check_branch
          %562 = sbr.rel (%p560) target = $region52
        $region51: #{tpu_custom_call.1} parent=35 // pred_region
          %s564 = ssub.s32 16, 16
          %565 = vsyncadd %s541, %s564
          %s566 = smul.addr %s30, 16
          %s567 = scalar_lea.hbm %s6, %s566
          %s569 = sshll.u32 %s543, 4
          %s570 = int_to_ptr.vmem [resolvable:$true] %s569
          %572 = dma.vmem_to_hbm [thread:$0]  %s570, 16, %s567, %s541
        $region52: #{tpu_custom_call.1} parent=35 // pred_fallthru
          _
      $region36: #{tpu_custom_call.1} parent=5 // pred_fallthru
        _
      %p573 = scmp.le.s32.totalorder 2, %s21
      // Predicated region
      $region53: #{tpu_custom_call.1} parent=5 // pred_check
        %p574 = pneg %p573
      $region54: #{tpu_custom_call.1} parent=5 // pred_check_branch
        %576 = sbr.rel (%p574) target = $region56
      $region55: #{tpu_custom_call.1} parent=5 // pred_region
        %s577 = ssub.s32 %s21, 2
        // Predicated region
        $region57: #{tpu_custom_call.1} parent=55 // pred_check
          %p578 = pneg %p160
        $region58: #{tpu_custom_call.1} parent=55 // pred_check_branch
          %580 = sbr.rel (%p578) target = $region60
        $region59: #{tpu_custom_call.1} parent=55 // pred_region
          %p581 = scmp.lt.s32.totalorder %s32, 1
          %s582 = scalar_select %p581, %s32, 1
          %p583 = scmp.lt.s32.totalorder %s33, 0
          %s584 = scalar_select %p583, %s33, 0
          %s585 = smul.addr %s582, 4
          %s586 = sadd.s32 %s584, %s585
          %s587 = smul.addr %s586, 8
          %s588 = scalar_lea.vmem %s4, %s587
        $region60: #{tpu_custom_call.1} parent=55 // pred_fallthru
          _
        // Predicated region
        $region61: #{tpu_custom_call.1} parent=55 // pred_check
          %p589 = pneg %p186
        $region62: #{tpu_custom_call.1} parent=55 // pred_check_branch
          %591 = sbr.rel (%p589) target = $region64
        $region63: #{tpu_custom_call.1} parent=55 // pred_region
          %s592 = sand.u32 %s171, 1
          %s593 = scalar_lea.sflag [#allocation4], %s592
          %s594 = sand.u32 %s171, 1
          %s595 = scalar_lea.vmem [#allocation3], %s594
          %596 = dma.done %s593, 16
        $region64: #{tpu_custom_call.1} parent=55 // pred_fallthru
          _
        // Predicated region
        $region65: #{tpu_custom_call.1} parent=55 // pred_check
          %p597 = pneg %p212
        $region66: #{tpu_custom_call.1} parent=55 // pred_check_branch
          %599 = sbr.rel (%p597) target = $region68
        $region67: #{tpu_custom_call.1} parent=55 // pred_region
          %s600 = sand.u32 %s197, 1
          %s601 = scalar_lea.sflag [#allocation6], %s600
          %s602 = sand.u32 %s197, 1
          %s603 = scalar_lea.vmem [#allocation5], %s602
          %604 = dma.done %s601, 16
        $region68: #{tpu_custom_call.1} parent=55 // pred_fallthru
          _
      $region56: #{tpu_custom_call.1} parent=5 // pred_fallthru
        _
    $region6: #{tpu_custom_call.1} parent=1 // loop_footer
      %s25 = sadd.s32 1, %s21
    $region7: #{tpu_custom_call.1} parent=1 // loop_footer_branch
      %20 = sbr.rel target = $region3
    $region8: #{tpu_custom_call.1} parent=1 // loop_exit
      _
    %605 = vsyncpa [#allocation4], 1
    %s606 = scalar_lea.sflag [#allocation4], 1
    %607 = vsyncpa %s606, 1
    %608 = vsyncpa [#allocation6], 1
    %s609 = scalar_lea.sflag [#allocation6], 1
    %610 = vsyncpa %s609, 1

</llo_original>
